<compile_context>
chip_gen: v7x
topology: tpu7x:2x2x1
jax: 0.10.0
libtpu: 0.0.40
codegen_flags: <defaults>
</compile_context>

<pallas_src>
import math

import jax
import jax.numpy as jnp
from jax.experimental import pallas as pl
from jax.experimental.pallas import tpu as pltpu


def _round_up(v, m):
    return ((v + m - 1) // m) * m


def _cdiv(a, b):
    return (a + b - 1) // b


def _lora_convT_kernel(x_ref, h_ref, w_ref, b_ref, o_ref, op_ref):
    """One (batch, time-tile) grid step.

    x_ref:  (1, C_in_p, TM)        main input slab (zero-padded input, NCL).
    h_ref:  (1, C_in_p, 128)       the 128 lanes immediately right of the slab.
    w_ref:  (C_out, K*C_in_p)      fused merged/flipped weight taps.
    b_ref:  (C_out, 1)             bias (f32).
    o_ref:  (1, C_out, TM)         output slab (time on the lane axis).
    op_ref: (K*C_in_p, TM)         VMEM scratch: fused windowed operand.
    """
    c = x_ref.shape[1]
    tm = x_ref.shape[2]
    k = w_ref.shape[1] // c

    # Tap 0: unshifted slab, straight aligned copy into the operand.
    op_ref[0:c, :] = x_ref[0]

    if k > 1:
        # Slab with its halo appended on the lane axis (aligned append).
        xw = jnp.concatenate([x_ref[0], h_ref[0]], axis=-1)      # (C, TM+128)
        width = xw.shape[-1]
        for s in range(1, k):                                    # static unroll, K small
            # Window shifted left by s lanes == circular roll right by
            # (width - s); the wraparound never reaches the first TM lanes
            # because s <= 128.  Roll runs on the XLU slot.
            op_ref[s * c:(s + 1) * c, :] = pltpu.roll(xw, shift=width - s, axis=1)[:, :tm]

    # ONE long-contraction MXU matmul (accumulation stays inside the MXU),
    # f32 bias epilogue, single cast to the output dtype.
    acc = jnp.dot(w_ref[...], op_ref[...], preferred_element_type=jnp.float32)
    o_ref[0] = (acc + b_ref[...]).astype(o_ref.dtype)


def lora_conv_transpose1d(x, weight, bias, lora_a, lora_b, scaling, *,
                          stride=1, padding=0, output_padding=0, dilation=1,
                          groups=1, tile_t=1024):
    """x: (N, C_in, L) NCL.  weight: (C_in, C_out, K).  bias: (C_out,).
    lora_a: (C_in, r, K).  lora_b: (r, C_out, 1).
    Returns (N, C_out, L + K - 1) in NCL layout."""
    assert stride == 1 and padding == 0 and output_padding == 0, \
        "only stride=1, padding=0, output_padding=0 implemented"
    assert dilation == 1 and groups == 1, "only dilation=1, groups=1 implemented"

    n, c_in, length = x.shape
    c_in_w, c_out, k = weight.shape
    assert c_in_w == c_in
    r = lora_a.shape[1]
    assert lora_a.shape == (c_in, r, k)
    assert lora_b.shape == (r, c_out, 1)
    assert k - 1 <= 128, "halo window is fixed at 128 lanes"
    l_out = length + k - 1                      # (L-1)*1 - 2*0 + 1*(K-1) + 0 + 1

    # ---- merge LoRA into the frozen weight in f32 (rank-r product) ----------
    w_eff = (weight.astype(jnp.float32)
             + scaling * jnp.einsum("crk,ro->cok",
                                    lora_a.astype(jnp.float32),
                                    lora_b[:, :, 0].astype(jnp.float32)))

    # Fused tap matrix: W2[o, s*C_in_p + c] = W_eff[c, o, K-1-s], with the
    # channel (contraction) dim zero-padded to a sublane multiple.
    c_in_p = _round_up(max(c_in, 8), 8)
    wt = jnp.flip(w_eff, axis=2).transpose(2, 1, 0)               # (K, C_out, C_in)
    wt = jnp.pad(wt, ((0, 0), (0, 0), (0, c_in_p - c_in)))        # (K, C_out, C_in_p)
    w2 = wt.transpose(1, 0, 2).reshape(c_out, k * c_in_p).astype(x.dtype)
    bias_col = bias.astype(jnp.float32).reshape(c_out, 1)

    # ---- per-generation VMEM budget (64 MiB/TC on v7x, 128 MiB v5e/v6e) -----
    isz = jnp.dtype(x.dtype).itemsize
    try:
        vmem_cap = int(pltpu.get_tpu_info().vmem_capacity_bytes)
    except Exception:
        vmem_cap = 64 * 1024 * 1024             # assume the smallest (v7x per-TC)
    vmem_limit = max(16 * 1024 * 1024,
                     min(int(0.75 * vmem_cap), vmem_cap - 8 * 1024 * 1024))

    def vmem_need(tm_):
        # NOTE: weights/bias are counted double-buffered (Pallas default even
        # for constant index maps); on v7x they could be single-buffered via
        # pipeline_mode=pl.Buffered(1) or a one-shot manual DMA.
        return (2 * c_in_p * tm_ * isz                # input slab x2
                + 2 * c_in_p * 128 * isz              # halo block x2
                + 2 * (k * c_out * c_in_p * isz + c_out * 4)   # weights + bias x2
                + 2 * c_out * tm_ * isz               # output slab x2
                + k * c_in_p * tm_ * isz              # fused operand scratch
                + 2 * c_in_p * (tm_ + 128) * isz      # xw + one rolled temp
                + c_out * tm_ * 4)                    # f32 matmul result

    tm = max(128, _round_up(min(tile_t, l_out), 128))
    while tm > 128 and vmem_need(tm) > int(0.8 * vmem_limit):
        tm -= 128
    # v7x has 2 TensorCores sharing the grid: make sure there are enough
    # parallel steps (prefer more, smaller time tiles over one huge tile).
    while n * _cdiv(l_out, tm) < 4 and tm > 256:
        tm -= 128

    n_tiles = _cdiv(l_out, tm)
    l_main = n_tiles * tm

    # Single wrapper pad: K-1 left zeros (full-correlation form), right zeros
    # up to the tile multiple plus the 128-lane halo, channel pad to C_in_p.
    xpad = jnp.zeros((n, c_in_p, l_main + 128), dtype=x.dtype)
    xpad = xpad.at[:, :c_in, k - 1:k - 1 + length].set(x)

    cost = pl.CostEstimate(
        flops=2 * n * l_main * c_out * (k * c_in_p),
        transcendentals=0,
        bytes_accessed=isz * (n * n_tiles * c_in_p * (tm + 128)
                              + k * c_out * c_in_p
                              + n * c_out * l_out) + 4 * c_out,
    )

    out = pl.pallas_call(
        _lora_convT_kernel,
        out_shape=jax.ShapeDtypeStruct((n, c_out, l_out), x.dtype),
        grid_spec=pltpu.PrefetchScalarGridSpec(
            num_scalar_prefetch=0,
            grid=(n, n_tiles),
            in_specs=[
                # main input slab (non-overlapping TM window)
                pl.BlockSpec((1, c_in_p, tm), lambda b, j: (b, 0, j)),
                # 128-lane halo: next 128 columns of the SAME padded array
                pl.BlockSpec((1, c_in_p, 128),
                             lambda b, j: (b, 0, (j + 1) * (tm // 128))),
                # resident fused weights + bias (constant index map)
                pl.BlockSpec((c_out, k * c_in_p), lambda b, j: (0, 0)),
                pl.BlockSpec((c_out, 1), lambda b, j: (0, 0)),
            ],
            out_specs=pl.BlockSpec((1, c_out, tm), lambda b, j: (b, 0, j)),
            scratch_shapes=[pltpu.VMEM((k * c_in_p, tm), x.dtype)],
        ),
        compiler_params=pltpu.CompilerParams(
            dimension_semantics=("parallel", "parallel"),
            vmem_limit_bytes=int(vmem_limit),
        ),
        cost_estimate=cost,
    )(xpad, xpad, w2, bias_col)

    return out


# ---------------- independent reference (mirrors the PyTorch forward) ---------
def _conv_transpose1d_ref(x, w):
    """F.conv_transpose1d with stride=1, padding=0, output_padding=0,
    dilation=1, groups=1.  x: (N, C_in, L), w: (C_in, C_out, K)."""
    length = x.shape[2]
    k = w.shape[2]
    out = jnp.zeros((x.shape[0], w.shape[1], length + k - 1), jnp.float32)
    for kk in range(k):
        out = out.at[:, :, kk:kk + length].add(jnp.einsum("ncl,co->nol", x, w[:, :, kk]))
    return out


def _reference(x, weight, bias, lora_a, lora_b, scaling):
    base = _conv_transpose1d_ref(x, weight) + bias[None, :, None]
    down = _conv_transpose1d_ref(x, lora_a)
    up = _conv_transpose1d_ref(down, lora_b)
    return base + up * scaling


if __name__ == "__main__":
    def run_case(key, n, c_in, c_out, length, k, r, lora_alpha=1.0):
        scaling = lora_alpha / r
        kx, kw, kb, ka, kbb = jax.random.split(key, 5)
        x = jax.random.normal(kx, (n, c_in, length), dtype=jnp.float32)
        # ConvTranspose1d parameter shapes: weight (C_in, C_out, K), bias (C_out,),
        # lora_a (C_in, r, K), lora_b (r, C_out, 1).
        bound = 1.0 / math.sqrt(c_out * k)
        weight = jax.random.uniform(kw, (c_in, c_out, k), jnp.float32, -bound, bound)
        bias = jax.random.uniform(kb, (c_out,), jnp.float32, -bound, bound)
        lora_a = jax.random.normal(ka, (c_in, r, k), jnp.float32) * math.sqrt(2.0 / (c_in * k))
        # lora_b is zero-initialized by the module; use random values here so the
        # LoRA branch actually contributes and the check is meaningful.
        lora_b = jax.random.normal(kbb, (r, c_out, 1), jnp.float32) * 0.1

        out = lora_conv_transpose1d(x, weight, bias, lora_a, lora_b, scaling)
        out = jax.block_until_ready(out)

        ref = _reference(x, weight, bias, lora_a, lora_b, scaling)
        assert out.shape == (n, c_out, length + k - 1), out.shape
        max_err = float(jnp.max(jnp.abs(out - ref)))
        assert jnp.allclose(out, ref, atol=1e-4, rtol=1e-4), max_err

    key = jax.random.PRNGKey(0)
    k1, k2 = jax.random.split(key)
    # Small config consistent with the module defaults (single time tile).
    run_case(k1, n=2, c_in=4, c_out=8, length=16, k=3, r=2)
    # Multi-tile config exercising the halo, channel padding and the ragged
    # (masked-store) final output tile.
    run_case(k2, n=2, c_in=12, c_out=16, length=300, k=5, r=3)

    print("KERNEL_OK")
</pallas_src>

<mosaic_0001>
module attributes {stable_mosaic.version = 11 : i64} {
  func.func @_lora_convT_kernel(%arg0: i32, %arg1: i32, %arg2: memref<1x8x128xf32, #tpu.memory_space<vmem>>, %arg3: memref<1x8x128xf32, #tpu.memory_space<vmem>>, %arg4: memref<8x24xf32, #tpu.memory_space<vmem>>, %arg5: memref<8x1xf32, #tpu.memory_space<vmem>>, %arg6: memref<1x8x128xf32, #tpu.memory_space<vmem>>, %arg7: memref<24x128xf32, #tpu.memory_space<vmem>>) attributes {dimension_semantics = [#tpu.dimension_semantics<parallel>, #tpu.dimension_semantics<parallel>], iteration_bounds = array<i64: 2, 1>, scalar_prefetch = 0 : i64, scratch_operands = 1 : i64, tpu.core_type = #tpu.core_type<tc>, window_params = [{transform_indices = @transform_0, window_bounds = array<i64: 1, 8, 128>}, {transform_indices = @transform_1, window_bounds = array<i64: 1, 8, 128>}, {pipeline_mode = #tpu.pipeline_mode<synchronous>, transform_indices = @transform_2, window_bounds = array<i64: 8, 24>}, {pipeline_mode = #tpu.pipeline_mode<synchronous>, transform_indices = @transform_3, window_bounds = array<i64: 8, 1>}, {transform_indices = @transform_4, window_bounds = array<i64: 1, 8, 128>}]} {
    %c0 = arith.constant 0 : index
    %c0_0 = arith.constant 0 : index
    %c0_1 = arith.constant 0 : index
    %0 = vector.load %arg2[%c0, %c0_0, %c0_1] : memref<1x8x128xf32, #tpu.memory_space<vmem>>, vector<1x8x128xf32>
    %1 = vector.shape_cast %0 : vector<1x8x128xf32> to vector<8x128xf32>
    %c0_2 = arith.constant 0 : index
    %c0_3 = arith.constant 0 : index
    %2 = vector.load %arg7[%c0_2, %c0_3] : memref<24x128xf32, #tpu.memory_space<vmem>>, vector<8x128xf32>
    tpu.vector_store %arg7[%c0_2, %c0_3], %1 {strides = array<i32>} : memref<24x128xf32, #tpu.memory_space<vmem>>, vector<8x128xf32>,
    %c0_4 = arith.constant 0 : index
    %c0_5 = arith.constant 0 : index
    %c0_6 = arith.constant 0 : index
    %3 = vector.load %arg2[%c0_4, %c0_5, %c0_6] : memref<1x8x128xf32, #tpu.memory_space<vmem>>, vector<1x8x128xf32>
    %4 = vector.shape_cast %3 : vector<1x8x128xf32> to vector<8x128xf32>
    %c0_7 = arith.constant 0 : index
    %c0_8 = arith.constant 0 : index
    %c0_9 = arith.constant 0 : index
    %5 = vector.load %arg3[%c0_7, %c0_8, %c0_9] : memref<1x8x128xf32, #tpu.memory_space<vmem>>, vector<1x8x128xf32>
    %6 = vector.shape_cast %5 : vector<1x8x128xf32> to vector<8x128xf32>
    %7 = tpu.concatenate %4, %6 in 1 : vector<8x128xf32>, vector<8x128xf32> -> vector<8x256xf32>
    %c255_i32 = arith.constant 255 : i32
    %8 = tpu.dynamic_rotate %7 by %c255_i32 dim 1 : vector<8x256xf32>, i32 -> vector<8x256xf32>
    %9 = vector.extract_strided_slice %8 {offsets = [0, 0], sizes = [8, 128], strides = [1, 1]} : vector<8x256xf32> to vector<8x128xf32>
    %c8 = arith.constant 8 : index
    %c0_10 = arith.constant 0 : index
    %10 = vector.load %arg7[%c8, %c0_10] : memref<24x128xf32, #tpu.memory_space<vmem>>, vector<8x128xf32>
    tpu.vector_store %arg7[%c8, %c0_10], %9 {strides = array<i32>} : memref<24x128xf32, #tpu.memory_space<vmem>>, vector<8x128xf32>,
    %c254_i32 = arith.constant 254 : i32
    %11 = tpu.dynamic_rotate %7 by %c254_i32 dim 1 : vector<8x256xf32>, i32 -> vector<8x256xf32>
    %12 = vector.extract_strided_slice %11 {offsets = [0, 0], sizes = [8, 128], strides = [1, 1]} : vector<8x256xf32> to vector<8x128xf32>
    %c16 = arith.constant 16 : index
    %c0_11 = arith.constant 0 : index
    %13 = vector.load %arg7[%c16, %c0_11] : memref<24x128xf32, #tpu.memory_space<vmem>>, vector<8x128xf32>
    tpu.vector_store %arg7[%c16, %c0_11], %12 {strides = array<i32>} : memref<24x128xf32, #tpu.memory_space<vmem>>, vector<8x128xf32>,
    %c0_12 = arith.constant 0 : index
    %c0_13 = arith.constant 0 : index
    %14 = vector.load %arg4[%c0_12, %c0_13] : memref<8x24xf32, #tpu.memory_space<vmem>>, vector<8x24xf32>
    %c0_14 = arith.constant 0 : index
    %c0_15 = arith.constant 0 : index
    %15 = vector.load %arg7[%c0_14, %c0_15] : memref<24x128xf32, #tpu.memory_space<vmem>>, vector<24x128xf32>
    %cst = arith.constant dense<0.000000e+00> : vector<8x128xf32>
    %16 = tpu.matmul %14, %15, %cst {dimension_numbers = #tpu.dot_dimension_numbers<[1], [0], [0], [1], [0, 0, 1, 1], [], []>} : vector<8x24xf32>, vector<24x128xf32>, vector<8x128xf32> -> vector<8x128xf32>
    %c0_16 = arith.constant 0 : index
    %c0_17 = arith.constant 0 : index
    %17 = vector.load %arg5[%c0_16, %c0_17] : memref<8x1xf32, #tpu.memory_space<vmem>>, vector<8x1xf32>
    %18 = vector.broadcast %17 : vector<8x1xf32> to vector<8x128xf32>
    %19 = arith.addf %16, %18 : vector<8x128xf32>
    %c0_18 = arith.constant 0 : index
    %c0_19 = arith.constant 0 : index
    %c0_20 = arith.constant 0 : index
    %20 = vector.load %arg6[%c0_18, %c0_19, %c0_20] : memref<1x8x128xf32, #tpu.memory_space<vmem>>, vector<1x8x128xf32>
    %21 = vector.shape_cast %20 : vector<1x8x128xf32> to vector<8x128xf32>
    %22 = vector.shape_cast %19 : vector<8x128xf32> to vector<1x8x128xf32>
    tpu.vector_store %arg6[%c0_18, %c0_19, %c0_20], %22 {strides = array<i32>} : memref<1x8x128xf32, #tpu.memory_space<vmem>>, vector<1x8x128xf32>,
    return
  }
  func.func @transform_0(%arg0: i32, %arg1: i32) -> (i32, i32, i32) {
    %c0_i32 = arith.constant 0 : i32
    %c0_i32_0 = arith.constant 0 : i32
    return %arg0, %c0_i32, %arg1 : i32, i32, i32
  }
  func.func @transform_1(%arg0: i32, %arg1: i32) -> (i32, i32, i32) {
    %c1_i32 = arith.constant 1 : i32
    %0 = arith.addi %arg1, %c1_i32 : i32
    %c1_i32_0 = arith.constant 1 : i32
    %1 = arith.muli %0, %c1_i32_0 : i32
    %c0_i32 = arith.constant 0 : i32
    %c0_i32_1 = arith.constant 0 : i32
    return %arg0, %c0_i32, %1 : i32, i32, i32
  }
  func.func @transform_2(%arg0: i32, %arg1: i32) -> (i32, i32) {
    %c0_i32 = arith.constant 0 : i32
    %c0_i32_0 = arith.constant 0 : i32
    %c0_i32_1 = arith.constant 0 : i32
    return %c0_i32, %c0_i32_0 : i32, i32
  }
  func.func @transform_3(%arg0: i32, %arg1: i32) -> (i32, i32) {
    %c0_i32 = arith.constant 0 : i32
    %c0_i32_0 = arith.constant 0 : i32
    %c0_i32_1 = arith.constant 0 : i32
    return %c0_i32, %c0_i32_0 : i32, i32
  }
  func.func @transform_4(%arg0: i32, %arg1: i32) -> (i32, i32, i32) {
    %c0_i32 = arith.constant 0 : i32
    %c0_i32_0 = arith.constant 0 : i32
    return %arg0, %c0_i32, %arg1 : i32, i32, i32
  }
}

</mosaic_0001>

<llo_original>
// kernel: tpu_custom_call.1
$region0: #{tpu_custom_call.1}
  #allocation0 [shape = 'u32[]', space=smem, size = 0x4, offset = 0x4, fixed_abs, tag = 'smem constant byte address 0x4 - core index']
  #allocation1 [shape = 'u32[144,128]{1,0:T(1,128)}', space=vmem, size = 0x12000, scoped, tag = 'internal scratch']
  #allocation2 [shape = 'f32[24,128]{1,0:T(8,128)}', space=vmem, size = 0x3000, scoped, tag = 'scratch operand']
  %s0 = inlined_call_operand.hbm [shape: f32[2,8,256], index: 0, kind: input, shape index: {}]
  %s1 = inlined_call_operand.hbm [shape: f32[2,8,256], index: 1, kind: input, shape index: {}]
  %s2 = inlined_call_operand.vmem [shape: f32[8,24], index: 2, kind: input, shape index: {}]
  %s3 = inlined_call_operand.vmem [shape: f32[8,1], index: 3, kind: input, shape index: {}]
  %s4 = inlined_call_operand.hbm [shape: f32[2,8,18], index: 4, kind: output, shape index: {}]
  %s5 = sld [smem:[#allocation0]]
  $region57: #{tpu_custom_call.1} parent=0
    _
  %s7 = ssub.s32 1, %s5
  %s8 = scalar_select 0, %s7, %s5
  $region1: #{tpu_custom_call.1} parent=0
    #allocation3 [shape = 'u8[8192]{0}', space=vmem, size = 0x2000, scoped, tag = 'input window, operand 0']
    #allocation4 [shape = 's32[2]{0}', space=sflag, size = 0x8, scoped, tag = 'scoped memory for tpu_custom_call.1']
    #allocation5 [shape = 's32[2]{0}', space=sflag, size = 0x8, scoped, tag = 'scoped memory for tpu_custom_call.1']
    #allocation6 [shape = 'u8[8192]{0}', space=vmem, size = 0x2000, scoped, tag = 'input window, operand 1']
    #allocation7 [shape = 's32[2]{0}', space=sflag, size = 0x8, scoped, tag = 'scoped memory for tpu_custom_call.1']
    #allocation8 [shape = 'u8[8192]{0}', space=vmem, size = 0x2000, scoped, tag = 'output window, operand 0']
    %9 = vsyncpa [#allocation4], 0
    %s10 = scalar_lea.sflag [#allocation4], 1
    %11 = vsyncpa %s10, 0
    %12 = vsyncpa [#allocation7], 0
    %s13 = scalar_lea.sflag [#allocation7], 1
    %14 = vsyncpa %s13, 0
    %15 = vsyncpa [#allocation5], 0
    %s16 = scalar_lea.sflag [#allocation5], 1
    %17 = vsyncpa %s16, 0
    loop: start=0, step=1, limit=4
    $region2: #{tpu_custom_call.1} parent=1 // loop_pre_header
      _
    $region3: #{tpu_custom_call.1} parent=1 // loop_header
      %s19 = sphi 0, %s23
      %p20 = scmp.ge.s32.totalorder %s19, 4
      %s26 = sphi 0, %s38
      %s27 = sphi 0, %s34
      %s28 = sphi 0, %s26
      %s29 = sphi 0, %s27
      %s30 = sphi 0, %s28
      %s31 = sphi 0, %s29
      %s43 = sphi 0, %s45
      %s46 = sphi 0, %s43
      %s47 = sphi 0, %s46
      %s63 = sphi 0, %s47
      %s73 = sphi 0, %s75
      %s76 = sphi 0, %s73
      %s77 = sphi 0, %s76
      %s93 = sphi 0, %s77
      %s97 = sphi 0, %s97
      %s99 = sphi 0, %s97
      %s100 = sphi 0, %s99
      %s114 = sphi 0, %s100
      %s118 = sphi 0, %s118
      %s120 = sphi 0, %s118
      %s121 = sphi 0, %s120
      %s135 = sphi 0, %s121
      %s143 = sphi 0, %s145
      %s146 = sphi 0, %s143
      %s147 = sphi 0, %s146
      %s163 = sphi 0, %s147
    $region4: #{tpu_custom_call.1} parent=1 // loop_header_branch
      %22 = sbr.rel (%p20) target = $region8
    $region5: #{tpu_custom_call.1} parent=1 // loop_body
      %s24 = ssub.s32 %s19, 1
      %s25 = ssub.s32 %s19, 2
      %s32 = sadd.s32 1, %s27
      %p33 = scmp.ge.s32.totalorder %s32, 1
      %s34 = scalar_select %p33, 0, %s32
      %s35 = sadd.s32 1, %s26
      %s36 = scalar_select %p33, %s35, %s26
      %p37 = scmp.ge.s32.totalorder %s36, 2
      %s38 = scalar_select %p37, 0, %s36
      %s39 = ssub.s32 %s26, %s38
      %s40 = ssub.s32 %s27, %s34
      %s41 = sor.u32 %s39, %s40
      %p42 = scmp.eq.s32.totalorder %s41, 0
      %s44 = sadd.s32 %s43, 1
      %s45 = scalar_select %p42, %s43, %s44
      %p48 = pneg %p42
      %p49 = scmp.eq.s32.totalorder %s19, 1
      %p50 = por %p48, %p49
      %p51 = scmp.ne.s32.totalorder %s43, %s46
      %p52 = scmp.eq.s32.totalorder %s19, 0
      %p53 = por %p51, %p52
      %p54 = scmp.ne.s32.totalorder %s43, %s46
      %p55 = scmp.eq.s32.totalorder %s24, 1
      %p56 = por %p54, %p55
      %p57 = scmp.ne.s32.totalorder %s46, %s47
      %p58 = scmp.eq.s32.totalorder %s24, 0
      %p59 = por %p57, %p58
      %p60 = scmp.ne.s32.totalorder %s46, %s47
      %p61 = scmp.eq.s32.totalorder %s25, 1
      %p62 = por %p60, %p61
      %p64 = scmp.ne.s32.totalorder %s47, %s63
      %p65 = scmp.eq.s32.totalorder %s25, 0
      %p66 = por %p64, %p65
      %s67 = sadd.s32 %s27, 1
      %s68 = sadd.s32 %s34, 1
      %s69 = ssub.s32 %s26, %s38
      %s70 = ssub.s32 %s67, %s68
      %s71 = sor.u32 %s69, %s70
      %p72 = scmp.eq.s32.totalorder %s71, 0
      %s74 = sadd.s32 %s73, 1
      %s75 = scalar_select %p72, %s73, %s74
      %p78 = pneg %p72
      %p79 = scmp.eq.s32.totalorder %s19, 1
      %p80 = por %p78, %p79
      %p81 = scmp.ne.s32.totalorder %s73, %s76
      %p82 = scmp.eq.s32.totalorder %s19, 0
      %p83 = por %p81, %p82
      %p84 = scmp.ne.s32.totalorder %s73, %s76
      %p85 = scmp.eq.s32.totalorder %s24, 1
      %p86 = por %p84, %p85
      %p87 = scmp.ne.s32.totalorder %s76, %s77
      %p88 = scmp.eq.s32.totalorder %s24, 0
      %p89 = por %p87, %p88
      %p90 = scmp.ne.s32.totalorder %s76, %s77
      %p91 = scmp.eq.s32.totalorder %s25, 1
      %p92 = por %p90, %p91
      %p94 = scmp.ne.s32.totalorder %s77, %s93
      %p95 = scmp.eq.s32.totalorder %s25, 0
      %p96 = por %p94, %p95
      %s98 = sadd.s32 %s97, 1
      %p101 = scmp.eq.s32.totalorder %s19, 1
      %p102 = scmp.ne.s32.totalorder %s97, %s99
      %p103 = scmp.eq.s32.totalorder %s19, 0
      %p104 = por %p102, %p103
      %p105 = scmp.ne.s32.totalorder %s97, %s99
      %p106 = scmp.eq.s32.totalorder %s24, 1
      %p107 = por %p105, %p106
      %p108 = scmp.ne.s32.totalorder %s99, %s100
      %p109 = scmp.eq.s32.totalorder %s24, 0
      %p110 = por %p108, %p109
      %p111 = scmp.ne.s32.totalorder %s99, %s100
      %p112 = scmp.eq.s32.totalorder %s25, 1
      %p113 = por %p111, %p112
      %p115 = scmp.ne.s32.totalorder %s100, %s114
      %p116 = scmp.eq.s32.totalorder %s25, 0
      %p117 = por %p115, %p116
      %s119 = sadd.s32 %s118, 1
      %p122 = scmp.eq.s32.totalorder %s19, 1
      %p123 = scmp.ne.s32.totalorder %s118, %s120
      %p124 = scmp.eq.s32.totalorder %s19, 0
      %p125 = por %p123, %p124
      %p126 = scmp.ne.s32.totalorder %s118, %s120
      %p127 = scmp.eq.s32.totalorder %s24, 1
      %p128 = por %p126, %p127
      %p129 = scmp.ne.s32.totalorder %s120, %s121
      %p130 = scmp.eq.s32.totalorder %s24, 0
      %p131 = por %p129, %p130
      %p132 = scmp.ne.s32.totalorder %s120, %s121
      %p133 = scmp.eq.s32.totalorder %s25, 1
      %p134 = por %p132, %p133
      %p136 = scmp.ne.s32.totalorder %s121, %s135
      %p137 = scmp.eq.s32.totalorder %s25, 0
      %p138 = por %p136, %p137
      %s139 = ssub.s32 %s26, %s38
      %s140 = ssub.s32 %s27, %s34
      %s141 = sor.u32 %s139, %s140
      %p142 = scmp.eq.s32.totalorder %s141, 0
      %s144 = sadd.s32 %s143, 1
      %s145 = scalar_select %p142, %s143, %s144
      %p148 = pneg %p142
      %p149 = scmp.eq.s32.totalorder %s19, 1
      %p150 = por %p148, %p149
      %p151 = scmp.ne.s32.totalorder %s143, %s146
      %p152 = scmp.eq.s32.totalorder %s19, 0
      %p153 = por %p151, %p152
      %p154 = scmp.ne.s32.totalorder %s143, %s146
      %p155 = scmp.eq.s32.totalorder %s24, 1
      %p156 = por %p154, %p155
      %p157 = scmp.ne.s32.totalorder %s146, %s147
      %p158 = scmp.eq.s32.totalorder %s24, 0
      %p159 = por %p157, %p158
      %p160 = scmp.ne.s32.totalorder %s146, %s147
      %p161 = scmp.eq.s32.totalorder %s25, 1
      %p162 = por %p160, %p161
      %p164 = scmp.ne.s32.totalorder %s147, %s163
      %p165 = scmp.eq.s32.totalorder %s25, 0
      %p166 = por %p164, %p165
      %p167 = scmp.le.s32.totalorder 1, %s19
      %p168 = scmp.lt.s32.totalorder %s19, 3
      %p169 = pnand %p167, %p168
      %p170 = pneg %p169
      // Predicated region
      $region9: #{tpu_custom_call.1} parent=5 // pred_check
        _
      $region10: #{tpu_custom_call.1} parent=5 // pred_check_branch
        %172 = sbr.rel (%p169) target = $region12
      $region11: #{tpu_custom_call.1} parent=5 // pred_region
        %s173 = ssub.s32 %s19, 1
        // Predicated region
        $region13: #{tpu_custom_call.1} parent=11 // pred_check
          %p174 = pneg %p110
        $region14: #{tpu_custom_call.1} parent=11 // pred_check_branch
          %176 = sbr.rel (%p174) target = $region16
        $region15: #{tpu_custom_call.1} parent=11 // pred_region
          _
        $region16: #{tpu_custom_call.1} parent=11 // pred_fallthru
          _
        // Predicated region
        $region17: #{tpu_custom_call.1} parent=11 // pred_check
          %p177 = pneg %p131
        $region18: #{tpu_custom_call.1} parent=11 // pred_check_branch
          %179 = sbr.rel (%p177) target = $region20
        $region19: #{tpu_custom_call.1} parent=11 // pred_region
          _
        $region20: #{tpu_custom_call.1} parent=11 // pred_fallthru
          _
      $region12: #{tpu_custom_call.1} parent=5 // pred_fallthru
        _
      %p180 = scmp.lt.s32.totalorder %s19, 2
      // Predicated region
      $region21: #{tpu_custom_call.1} parent=5 // pred_check
        %p181 = pneg %p180
      $region22: #{tpu_custom_call.1} parent=5 // pred_check_branch
        %183 = sbr.rel (%p181) target = $region24
      $region23: #{tpu_custom_call.1} parent=5 // pred_region
        // Predicated region
        $region25: #{tpu_custom_call.1} parent=23 // pred_check
          %p184 = pneg %p53
        $region26: #{tpu_custom_call.1} parent=23 // pred_check_branch
          %186 = sbr.rel (%p184) target = $region28
        $region27: #{tpu_custom_call.1} parent=23 // pred_region
          %s187 = sand.u32 %s43, 1
          %s188 = scalar_lea.sflag [#allocation4], %s187
          %s189 = sand.u32 %s43, 1
          %s190 = smul.addr %s189, 8
          %s191 = scalar_lea.vmem [#allocation3], %s190
          %s193 = ssub.s32 128, 128
          %194 = vsyncadd %s188, %s193
          %s195 = smul.addr %s26, 2
          %s196 = sadd.s32 %s27, %s195
          %s197 = smul.addr %s196, 128
          %s198 = scalar_lea.hbm %s0, %s197
          %s200 = sshll.u32 %s191, 4
          %s201 = int_to_ptr.vmem [resolvable:$true] %s200
          %203 = dma.hbm_to_vmem [thread:$0]  %s198, 128, %s201, %s188
        $region28: #{tpu_custom_call.1} parent=23 // pred_fallthru
          _
        // Predicated region
        $region29: #{tpu_custom_call.1} parent=23 // pred_check
          %p204 = pneg %p83
        $region30: #{tpu_custom_call.1} parent=23 // pred_check_branch
          %206 = sbr.rel (%p204) target = $region32
        $region31: #{tpu_custom_call.1} parent=23 // pred_region
          %s207 = sand.u32 %s73, 1
          %s208 = scalar_lea.sflag [#allocation7], %s207
          %s209 = sand.u32 %s73, 1
          %s210 = smul.addr %s209, 8
          %s211 = scalar_lea.vmem [#allocation6], %s210
          %s212 = sadd.s32 %s27, 1
          %s214 = ssub.s32 128, 128
          %215 = vsyncadd %s208, %s214
          %s216 = smul.addr %s26, 2
          %s217 = sadd.s32 %s212, %s216
          %s218 = smul.addr %s217, 128
          %s219 = scalar_lea.hbm %s1, %s218
          %s221 = sshll.u32 %s211, 4
          %s222 = int_to_ptr.vmem [resolvable:$true] %s221
          %224 = dma.hbm_to_vmem [thread:$0]  %s219, 128, %s222, %s208
        $region32: #{tpu_custom_call.1} parent=23 // pred_fallthru
          _
      $region24: #{tpu_custom_call.1} parent=5 // pred_fallthru
        _
      %p225 = scmp.le.s32.totalorder 1, %s19
      %p226 = scmp.lt.s32.totalorder %s19, 3
      %p227 = pnand %p225, %p226
      %p228 = pneg %p227
      // Predicated region
      $region33: #{tpu_custom_call.1} parent=5 // pred_check
        _
      $region34: #{tpu_custom_call.1} parent=5 // pred_check_branch
        %230 = sbr.rel (%p227) target = $region36
      $region35: #{tpu_custom_call.1} parent=5 // pred_region
        %s231 = ssub.s32 %s19, 1
        %s232 = sand.u32 %s46, 1
        %s233 = scalar_lea.sflag [#allocation4], %s232
        %s234 = sand.u32 %s46, 1
        %s235 = smul.addr %s234, 8
        %s236 = scalar_lea.vmem [#allocation3], %s235
        // Predicated region
        $region37: #{tpu_custom_call.1} parent=35 // pred_check
          %p237 = pneg %p59
        $region38: #{tpu_custom_call.1} parent=35 // pred_check_branch
          %239 = sbr.rel (%p237) target = $region40
        $region39: #{tpu_custom_call.1} parent=35 // pred_region
          %240 = dma.done %s233, 128
        $region40: #{tpu_custom_call.1} parent=35 // pred_fallthru
          _
        %s241 = sand.u32 %s76, 1
        %s242 = scalar_lea.sflag [#allocation7], %s241
        %s243 = sand.u32 %s76, 1
        %s244 = smul.addr %s243, 8
        %s245 = scalar_lea.vmem [#allocation6], %s244
        // Predicated region
        $region41: #{tpu_custom_call.1} parent=35 // pred_check
          %p246 = pneg %p89
        $region42: #{tpu_custom_call.1} parent=35 // pred_check_branch
          %248 = sbr.rel (%p246) target = $region44
        $region43: #{tpu_custom_call.1} parent=35 // pred_region
          %249 = dma.done %s242, 128
        $region44: #{tpu_custom_call.1} parent=35 // pred_fallthru
          _
        %s250 = sand.u32 %s46, 1
        %s251 = scalar_lea.sflag [#allocation4], %s250
        %s252 = sand.u32 %s46, 1
        %s253 = smul.addr %s252, 8
        %s254 = scalar_lea.vmem [#allocation3], %s253
        %p255 = pneg %p59
        %p256 = pneg %p56
        %s257 = sand.u32 %s76, 1
        %s258 = scalar_lea.sflag [#allocation7], %s257
        %s259 = sand.u32 %s76, 1
        %s260 = smul.addr %s259, 8
        %s261 = scalar_lea.vmem [#allocation6], %s260
        %p262 = pneg %p89
        %p263 = pneg %p86
        %p264 = pneg %p110
        %p265 = pneg %p107
        %p266 = pneg %p131
        %p267 = pneg %p128
        %p268 = pneg %p159
        %p269 = pneg %p156
        %s270 = sand.u32 %s146, 1
        %s271 = scalar_lea.sflag [#allocation5], %s270
        %s272 = sand.u32 %s146, 1
        %s273 = smul.addr %s272, 8
        %s274 = scalar_lea.vmem [#allocation8], %s273
        %s275 = sadd.s32 %s29, 1
        %v276 = vld [vmem:[%s236] sm:$0xff]
        %277 = vst [vmem:[#allocation2] sm:$0xff] %v276
        %v278 = vld [vmem:[%s236] sm:$0xff]
        %v279 = vld [vmem:[%s245] sm:$0xff]
        %280 = vrot.lane.b32.xlu0 %v278, 127
        %v281 = vpop.permute.xlu0 %280
        %282 = vrot.lane.b32.xlu0 %v279, 127
        %v283 = vpop.permute.xlu0 %282
        %v284 = vlaneseq
        %v285 = vand.u32 %v284, 127
        %vm286 = vcmp.lt.s32.totalorder %v285, 127
        %v287 = vsel %vm286, %v281, %v283
        %288 = vst [vmem:[#allocation2 + $0x8] sm:$0xff] %v287
        %289 = vrot.lane.b32.xlu0 %v278, 126
        %v290 = vpop.permute.xlu0 %289
        %291 = vrot.lane.b32.xlu0 %v279, 126
        %v292 = vpop.permute.xlu0 %291
        %vm293 = vcmp.lt.s32.totalorder %v285, 126
        %v294 = vsel %vm293, %v290, %v292
        %295 = vst [vmem:[#allocation2 + $0x10] sm:$0xff] %v294
        %v296 = vld [vmem:[%s2] sm:$0xff]
        %v297 = vld [vmem:[#allocation2] sm:$0xff]
        %v298 = vld [vmem:[#allocation2 + $0x8] sm:$0xff]
        %v299 = vld [vmem:[#allocation2 + $0x10] sm:$0xff]
        %v300 = vld [vmem:[%s3] sm:$0xff]
        %302 = vset.pattern.permute.xlu0 0
        %303 = vperm.xlu0 %302, %v300
        %v304 = vpop.permute.xlu0 %303
        %vm306 = vcmask 195584
        %v308 = vsel %vm306, %v296, 0
        %310 = vmatprep.subr.mxu0 0.0
        %311 = vmatpush1.msra.mxu0 %v297
        %312 = vmatprep.subr.mxu0 0.0
        %313 = vmatpush1.msra.mxu0 %v298
        %314 = vmatprep.subr.mxu0 0.0
        %315 = vmatpush1.msra.mxu0 %v299
        %316 = vmatprep.subr.mxu0 0.0
        %317 = vmatpush1.msra.mxu0 0.0
        %318 = vmatprep.subr.mxu0 0.0
        %319 = vmatpush1.msra.mxu0 0.0
        %320 = vmatprep.subr.mxu0 0.0
        %321 = vmatpush1.msra.mxu0 0.0
        %322 = vmatprep.subr.mxu0 0.0
        %323 = vmatpush1.msra.mxu0 0.0
        %324 = vmatprep.subr.mxu0 0.0
        %325 = vmatpush1.msra.mxu0 0.0
        %326 = vmatprep.subr.mxu0 0.0
        %327 = vmatpush1.msra.mxu0 0.0
        %328 = vmatprep.subr.mxu0 0.0
        %329 = vmatpush1.msra.mxu0 0.0
        %330 = vmatprep.subr.mxu0 0.0
        %331 = vmatpush1.msra.mxu0 0.0
        %332 = vmatprep.subr.mxu0 0.0
        %333 = vmatpush1.msra.mxu0 0.0
        %334 = vmatprep.subr.mxu0 0.0
        %335 = vmatpush1.msra.mxu0 0.0
        %336 = vmatprep.subr.mxu0 0.0
        %337 = vmatpush1.msra.mxu0 0.0
        %338 = vmatprep.subr.mxu0 0.0
        %339 = vmatpush1.msra.mxu0 0.0
        %340 = vmatprep.subr.mxu0 0.0
        %341 = vmatpush1.msra.mxu0 0.0
        %342 = vmatprep.subr.mxu0 0.0
        %343 = vmatpush1.msra.mxu0 0.0
        %344 = vmatprep.subr.mxu0 0.0
        %345 = vmatpush1.msra.mxu0 0.0
        %346 = vmatprep.subr.mxu0 0.0
        %347 = vmatpush1.msra.mxu0 0.0
        %348 = vmatprep.subr.mxu0 0.0
        %349 = vmatpush1.msra.mxu0 0.0
        %350 = vmatprep.subr.mxu0 0.0
        %351 = vmatpush1.msra.mxu0 0.0
        %352 = vmatprep.subr.mxu0 0.0
        %353 = vmatpush1.msra.mxu0 0.0
        %354 = vmatprep.subr.mxu0 0.0
        %355 = vmatpush1.msra.mxu0 0.0
        %356 = vmatprep.subr.mxu0 0.0
        %357 = vmatpush1.msra.mxu0 0.0
        %358 = vmatprep.subr.mxu0 0.0
        %359 = vmatpush1.msra.mxu0 0.0
        %360 = vmatprep.subr.mxu0 0.0
        %361 = vmatpush1.msra.mxu0 0.0
        %362 = vmatprep.subr.mxu0 0.0
        %363 = vmatpush1.msra.mxu0 0.0
        %364 = vmatprep.subr.mxu0 0.0
        %365 = vmatpush1.msra.mxu0 0.0
        %366 = vmatprep.subr.mxu0 0.0
        %367 = vmatpush1.msra.mxu0 0.0
        %368 = vmatprep.subr.mxu0 0.0
        %369 = vmatpush1.msra.mxu0 0.0
        %370 = vmatprep.subr.mxu0 0.0
        %371 = vmatpush1.msra.mxu0 0.0
        %372 = vmatprep.subr.mxu0 0.0
        %373 = vmatpush1.msra.mxu0 0.0
        %374 = vmatprep.mubr.f32.mxu0 0.0
        %375 = vmatmul.mubr.f32.gmra.mrb[0].mxu0 %v308
        %v376 = vpop.f32.mrb[0].mxu0
        %v377 = vadd.f32 %v304, %v376
        %v378 = vpop.f32.mrb[0].mxu0
        %379 = vdwg.mxu0
        %380 = vst [vmem:[%s274] sm:$0xff] %v377
        %s381 = sand.u32 %s146, 1
        %s382 = scalar_lea.sflag [#allocation5], %s381
        %s383 = sand.u32 %s146, 1
        %s384 = smul.addr %s383, 8
        %s385 = scalar_lea.vmem [#allocation8], %s384
        // Predicated region
        $region45: #{tpu_custom_call.1} parent=35 // pred_check
          %p386 = pneg %p156
        $region46: #{tpu_custom_call.1} parent=35 // pred_check_branch
          %388 = sbr.rel (%p386) target = $region48
        $region47: #{tpu_custom_call.1} parent=35 // pred_region
          %s390 = ssub.s32 128, 128
          %391 = vsyncadd %s382, %s390
          %s392 = sadd.s32 %s29, %s28
          %s393 = smul.addr %s392, 128
          %s394 = scalar_lea.hbm %s4, %s393
          %s396 = sshll.u32 %s385, 4
          %s397 = int_to_ptr.vmem [resolvable:$true] %s396
          %399 = dma.vmem_to_hbm [thread:$0]  %s397, 128, %s394, %s382
        $region48: #{tpu_custom_call.1} parent=35 // pred_fallthru
          _
      $region36: #{tpu_custom_call.1} parent=5 // pred_fallthru
        _
      %p400 = scmp.le.s32.totalorder 2, %s19
      // Predicated region
      $region49: #{tpu_custom_call.1} parent=5 // pred_check
        %p401 = pneg %p400
      $region50: #{tpu_custom_call.1} parent=5 // pred_check_branch
        %403 = sbr.rel (%p401) target = $region52
      $region51: #{tpu_custom_call.1} parent=5 // pred_region
        %s404 = ssub.s32 %s19, 2
        // Predicated region
        $region53: #{tpu_custom_call.1} parent=51 // pred_check
          %p405 = pneg %p162
        $region54: #{tpu_custom_call.1} parent=51 // pred_check_branch
          %407 = sbr.rel (%p405) target = $region56
        $region55: #{tpu_custom_call.1} parent=51 // pred_region
          %s408 = sand.u32 %s147, 1
          %s409 = scalar_lea.sflag [#allocation5], %s408
          %s410 = sand.u32 %s147, 1
          %s411 = smul.addr %s410, 8
          %s412 = scalar_lea.vmem [#allocation8], %s411
          %413 = dma.done %s409, 128
        $region56: #{tpu_custom_call.1} parent=51 // pred_fallthru
          _
      $region52: #{tpu_custom_call.1} parent=5 // pred_fallthru
        _
    $region6: #{tpu_custom_call.1} parent=1 // loop_footer
      %s23 = sadd.s32 1, %s19
    $region7: #{tpu_custom_call.1} parent=1 // loop_footer_branch
      %18 = sbr.rel target = $region3
    $region8: #{tpu_custom_call.1} parent=1 // loop_exit
      _
    %414 = vsyncpa [#allocation4], 1
    %s415 = scalar_lea.sflag [#allocation4], 1
    %416 = vsyncpa %s415, 1
    %417 = vsyncpa [#allocation7], 1
    %s418 = scalar_lea.sflag [#allocation7], 1
    %419 = vsyncpa %s418, 1
    %420 = vsyncpa [#allocation5], 1
    %s421 = scalar_lea.sflag [#allocation5], 1
    %422 = vsyncpa %s421, 1

</llo_original>
